<compile_context>
chip_gen: v6e
topology: v6e:2x2x1
jax: 0.10.0
libtpu: 0.0.40
codegen_flags: <defaults>
</compile_context>

<pallas_src>
import jax
import jax.numpy as jnp
from jax.experimental import pallas as pl
from jax.experimental.pallas import tpu as pltpu


def _scale_mul_kernel(x_ref, g_ref, o_ref):
    # x_ref / o_ref: (tb, L) data tile.  g_ref: (1, L) precomputed gain tile
    # (resident across grid steps: its index_map always returns (0, 0)).
    # Pure broadcasted multiply -> the grid loop is HBM-bandwidth bound.
    o_ref[...] = x_ref[...] * g_ref[...]


def _launch(x2d, gain2d, tb):
    rows, lanes = x2d.shape
    grid = (pl.cdiv(rows, tb),)
    return pl.pallas_call(
        _scale_mul_kernel,
        out_shape=jax.ShapeDtypeStruct((rows, lanes), x2d.dtype),
        grid_spec=pltpu.PrefetchScalarGridSpec(
            num_scalar_prefetch=0,
            grid=grid,
            in_specs=[
                pl.BlockSpec((tb, lanes), lambda i: (i, 0)),   # data tile
                pl.BlockSpec((1, lanes), lambda i: (0, 0)),    # gain (resident)
            ],
            out_specs=pl.BlockSpec((tb, lanes), lambda i: (i, 0)),
        ),
        compiler_params=pltpu.CompilerParams(
            dimension_semantics=("parallel",),
            # ~2 MiB actual footprint (double-buffered in+out tiles); set an
            # explicit limit that is safe on v5e/v6e/v7x rather than inheriting
            # a generation-specific default.
            vmem_limit_bytes=32 * 1024 * 1024,
        ),
    )(x2d, gain2d)


def scale_forward(x, scale, *, tb=1024):
    """Scale.forward: out = x * exp(scale * 3).

    x: (B, C) float, scale: (1, C) float -> (B, C) float.
    """
    B, C = x.shape
    assert scale.shape == (1, C)

    # Gain is tiny: compute exp(3*scale) once here instead of once per tile.
    gain = jnp.exp(scale.astype(jnp.float32) * 3.0).astype(x.dtype)

    lane = 128
    total = B * C
    if total % lane == 0 and lane % C == 0:
        # Lane-dense path: fold (128 // C) consecutive batch rows into each
        # 128-lane row; tile the per-channel gain to match. Full-lane vregs
        # and unmasked stores.
        fold = lane // C
        rows = total // lane
        x2d = x.reshape(rows, lane)
        gain2d = jnp.tile(gain, (1, fold))            # (1, 128)
        lanes = lane
    else:
        # Fallback: channels already wide / not 128-divisible; keep (B, C).
        rows, lanes = B, C
        x2d = x
        gain2d = gain

    # Block selection: single full-extent block for small inputs (always a
    # legal BlockSpec), otherwise a multiple-of-8 row block so the (8, 128)
    # constraint holds and only the ragged tail (if any) is masked.
    if rows <= tb:
        blk = rows
    else:
        blk = max(8, (tb // 8) * 8)

    out2d = _launch(x2d, gain2d, blk)
    return out2d.reshape(B, C)


if __name__ == "__main__":
    key = jax.random.PRNGKey(0)
    kx, ks = jax.random.split(key)

    B, C = 8, 32  # batch, in_ch (small demo shapes)
    x = jax.random.normal(kx, (B, C), dtype=jnp.float32)

    # Module __init__ uses zeros(1, in_ch); use a deterministic non-zero init
    # here so the exp(scale*3) path is actually exercised.
    scale = 0.1 * jax.random.normal(ks, (1, C), dtype=jnp.float32)

    out = scale_forward(x, scale)
    out = jax.block_until_ready(out)

    ref = x * jnp.exp(scale * 3.0)
    assert out.shape == ref.shape and out.dtype == ref.dtype
    assert jnp.allclose(out, ref, atol=1e-5, rtol=1e-5)

    print("KERNEL_OK")
</pallas_src>

<mosaic_0001>
module attributes {stable_mosaic.version = 11 : i64} {
  func.func @_scale_mul_kernel(%arg0: i32, %arg1: memref<2x128xf32, #tpu.memory_space<vmem>>, %arg2: memref<1x128xf32, #tpu.memory_space<vmem>>, %arg3: memref<2x128xf32, #tpu.memory_space<vmem>>) attributes {dimension_semantics = [#tpu.dimension_semantics<parallel>], iteration_bounds = array<i64: 1>, scalar_prefetch = 0 : i64, scratch_operands = 0 : i64, tpu.core_type = #tpu.core_type<tc>, window_params = [{transform_indices = @transform_0, window_bounds = array<i64: 2, 128>}, {pipeline_mode = #tpu.pipeline_mode<synchronous>, transform_indices = @transform_1, window_bounds = array<i64: 1, 128>}, {transform_indices = @transform_2, window_bounds = array<i64: 2, 128>}]} {
    %c0 = arith.constant 0 : index
    %c0_0 = arith.constant 0 : index
    %0 = vector.load %arg1[%c0, %c0_0] : memref<2x128xf32, #tpu.memory_space<vmem>>, vector<2x128xf32>
    %c0_1 = arith.constant 0 : index
    %c0_2 = arith.constant 0 : index
    %1 = vector.load %arg2[%c0_1, %c0_2] : memref<1x128xf32, #tpu.memory_space<vmem>>, vector<1x128xf32>
    %2 = vector.broadcast %1 : vector<1x128xf32> to vector<2x128xf32>
    %3 = arith.mulf %0, %2 : vector<2x128xf32>
    %c0_3 = arith.constant 0 : index
    %c0_4 = arith.constant 0 : index
    %4 = vector.load %arg3[%c0_3, %c0_4] : memref<2x128xf32, #tpu.memory_space<vmem>>, vector<2x128xf32>
    tpu.vector_store %arg3[%c0_3, %c0_4], %3 {strides = array<i32>} : memref<2x128xf32, #tpu.memory_space<vmem>>, vector<2x128xf32>,
    return
  }
  func.func @transform_0(%arg0: i32) -> (i32, i32) {
    %c0_i32 = arith.constant 0 : i32
    %c0_i32_0 = arith.constant 0 : i32
    return %arg0, %c0_i32 : i32, i32
  }
  func.func @transform_1(%arg0: i32) -> (i32, i32) {
    %c0_i32 = arith.constant 0 : i32
    %c0_i32_0 = arith.constant 0 : i32
    %c0_i32_1 = arith.constant 0 : i32
    return %c0_i32, %c0_i32_0 : i32, i32
  }
  func.func @transform_2(%arg0: i32) -> (i32, i32) {
    %c0_i32 = arith.constant 0 : i32
    %c0_i32_0 = arith.constant 0 : i32
    return %arg0, %c0_i32 : i32, i32
  }
}

</mosaic_0001>

<llo_original>
// kernel: tpu_custom_call.1
$region0: #{tpu_custom_call.1}
  #allocation0 [shape = 'u32[]', space=smem, size = 0x4, offset = 0x4, fixed_abs, tag = 'smem constant byte address 0x4 - core index']
  #allocation1 [shape = 'u32[144,128]{1,0:T(1,128)}', space=vmem, size = 0x12000, scoped, tag = 'internal scratch']
  %s0 = inlined_call_operand.hbm [shape: f32[2,128], index: 0, kind: input, shape index: {}]
  %s1 = inlined_call_operand.vmem [shape: f32[1,128], index: 1, kind: input, shape index: {}]
  %s2 = inlined_call_operand.hbm [shape: f32[2,128], index: 2, kind: output, shape index: {}]
  %s3 = sld [smem:[#allocation0]]
  $region22: #{tpu_custom_call.1} parent=0
    _
  %s5 = ssub.s32 1, %s3
  %s6 = scalar_select 0, %s5, %s3
  $region1: #{tpu_custom_call.1} parent=0
    #allocation2 [shape = 'u8[1024]{0}', space=vmem, size = 0x400, scoped, tag = 'input window, operand 0, single buffered']
    #allocation3 [shape = 's32[1]{0}', space=sflag, size = 0x4, scoped, tag = 'scoped memory for tpu_custom_call.1']
    #allocation4 [shape = 's32[1]{0}', space=sflag, size = 0x4, scoped, tag = 'scoped memory for tpu_custom_call.1']
    #allocation5 [shape = 'u8[1024]{0}', space=vmem, size = 0x400, scoped, tag = 'output window, operand 0, single buffered']
    %7 = vsyncpa [#allocation3], 0
    %8 = vsyncpa [#allocation4], 0
    // Predicated region
    $region2: #{tpu_custom_call.1} parent=1 // pred_check
      _
    $region3: #{tpu_custom_call.1} parent=1 // pred_check_branch
      %10 = sbr.rel (0) target = $region5
    $region4: #{tpu_custom_call.1} parent=1 // pred_region
      %s12 = ssub.s32 32, 32
      %13 = vsyncadd [#allocation3], %s12
      %s15 = sshll.u32 [#allocation2], 4
      %s16 = int_to_ptr.vmem [resolvable:$true] %s15
      %18 = dma.hbm_to_vmem [thread:$0]  %s0, 32, %s16, [#allocation3]
    $region5: #{tpu_custom_call.1} parent=1 // pred_fallthru
      _
    // Predicated region
    $region6: #{tpu_custom_call.1} parent=1 // pred_check
      _
    $region7: #{tpu_custom_call.1} parent=1 // pred_check_branch
      %20 = sbr.rel (0) target = $region9
    $region8: #{tpu_custom_call.1} parent=1 // pred_region
      _
    $region9: #{tpu_custom_call.1} parent=1 // pred_fallthru
      _
    // Predicated region
    $region10: #{tpu_custom_call.1} parent=1 // pred_check
      _
    $region11: #{tpu_custom_call.1} parent=1 // pred_check_branch
      %22 = sbr.rel (0) target = $region13
    $region12: #{tpu_custom_call.1} parent=1 // pred_region
      %23 = dma.done [#allocation3], 32
    $region13: #{tpu_custom_call.1} parent=1 // pred_fallthru
      _
    %v24 = vld [vmem:[#allocation2] sm:$0x3]
    %v25 = vld [vmem:[%s1] sm:$0x1]
    %v27 = vlaneseq
    %v28 = vshrl.u32 %v27, 7
    %v29 = vsub.s32 0, %v28
    %v30 = vrot.slane %v25, %v29
    %v32 = vmul.f32 %v24, %v30
    %33 = vst [vmem:[#allocation5] sm:$0x3] %v32
    // Predicated region
    $region14: #{tpu_custom_call.1} parent=1 // pred_check
      _
    $region15: #{tpu_custom_call.1} parent=1 // pred_check_branch
      %35 = sbr.rel (0) target = $region17
    $region16: #{tpu_custom_call.1} parent=1 // pred_region
      %s37 = ssub.s32 32, 32
      %38 = vsyncadd [#allocation4], %s37
      %s40 = sshll.u32 [#allocation5], 4
      %s41 = int_to_ptr.vmem [resolvable:$true] %s40
      %43 = dma.vmem_to_hbm [thread:$0]  %s41, 32, %s2, [#allocation4]
    $region17: #{tpu_custom_call.1} parent=1 // pred_fallthru
      _
    // Predicated region
    $region18: #{tpu_custom_call.1} parent=1 // pred_check
      _
    $region19: #{tpu_custom_call.1} parent=1 // pred_check_branch
      %45 = sbr.rel (0) target = $region21
    $region20: #{tpu_custom_call.1} parent=1 // pred_region
      %46 = dma.done [#allocation4], 32
    $region21: #{tpu_custom_call.1} parent=1 // pred_fallthru
      _
    %47 = vsyncpa [#allocation3], 1
    %48 = vsyncpa [#allocation4], 1

</llo_original>
